<compile_context>
chip_gen: v6e
topology: v6e:2x2x1
jax: 0.10.0
libtpu: 0.0.40
codegen_flags: <defaults>
</compile_context>

<pallas_src>
import math

import jax
import jax.numpy as jnp
from jax.experimental import pallas as pl
from jax.experimental.pallas import tpu as pltpu

_SQRT2 = math.sqrt(2.0)


def _mapping_kernel(x_ref, w_ref, b_ref, o_ref):
    # x_ref: (TB, D)  activation tile (native dtype, possibly bf16)
    # w_ref: (L, D_in, D_out)  EqualLinear scale already folded in
    # b_ref: (L, 1, D_out)     lr_mul already folded in (f32)
    # o_ref: (TB, D)
    x = x_ref[...].astype(jnp.float32)
    # PixelNorm over the feature (last/lane) axis.
    h = x * jax.lax.rsqrt(jnp.mean(x * x, axis=-1, keepdims=True) + 1e-8)

    n_layers = w_ref.shape[0]
    for l in range(n_layers):                      # static unroll; L is small
        y = jnp.dot(h.astype(w_ref.dtype), w_ref[l],
                    preferred_element_type=jnp.float32)
        y = y + b_ref[l]
        # fused leaky relu (slope 0.2) with sqrt(2) gain: one select + one mul
        h = y * jnp.where(y >= 0.0, _SQRT2, 0.2 * _SQRT2)

    o_ref[...] = h.astype(o_ref.dtype)


def prepare_params(weights, biases, lr_mul=0.01, param_dtype=jnp.bfloat16):
    """One-time parameter prep (outside the hot path).

    weights: (L, out, in) PyTorch layout -> (L, in, out) with EqualLinear scale
             folded in (cast to param_dtype; bf16 is the production default).
    biases:  (L, D) -> (L, 1, D) scaled by lr_mul, kept in f32.
    """
    L, d_out, d_in = weights.shape
    scale = (1.0 / math.sqrt(d_in)) * lr_mul
    w = (jnp.transpose(weights, (0, 2, 1)) * scale).astype(param_dtype)
    b = (biases.astype(jnp.float32) * lr_mul).reshape(L, 1, d_out)
    return w, b


def _vmem_ceiling_bytes():
    # Generation-aware VMEM cap: leave ~8 MiB headroom for compiler scratch
    # (v7x: 64 MiB/TC -> ~56 MiB; v5e/v6e: 128 MiB -> ~120 MiB).
    try:
        cap = int(pltpu.get_tpu_info().vmem_capacity_bytes)
    except Exception:
        cap = 64 << 20
    return max(cap - (8 << 20), 16 << 20)


def mapping_network(x, w, b, block_b=512, out_dtype=None):
    """x: (B, D); w: (L, D_in, D_out) prepped; b: (L, 1, D_out) prepped."""
    B, D = x.shape
    L = w.shape[0]
    out_dtype = jnp.dtype(x.dtype if out_dtype is None else out_dtype)

    # Batch tile: full extent for small batches (no padding), otherwise block_b
    # rows (multiple of 256 fills the MXU on v6e/v7x, 2x128 on v5e).  The last
    # tile may be ragged: Pallas clips the DMAs, the kernel is row-independent,
    # and out-of-range output rows are masked on store.
    TB = B if B <= block_b else block_b
    grid = pl.cdiv(B, TB)

    # VMEM budget: params and activation tiles are double-buffered by default.
    vmem_need = (2 * w.size * w.dtype.itemsize
                 + 2 * b.size * b.dtype.itemsize
                 + 2 * TB * D * x.dtype.itemsize
                 + 2 * TB * D * out_dtype.itemsize
                 + (2 << 20))
    vmem_limit = int(min(max(vmem_need, 16 << 20), _vmem_ceiling_bytes()))

    # NOTE: for production style_dim >= 512 the output lane axis is already
    # dense; if style_dim < 128 ever matters, a transposed (D, TB) layout
    # (batch on lanes) avoids masked vst.msk stores and an underfilled MXU.
    return pl.pallas_call(
        _mapping_kernel,
        out_shape=jax.ShapeDtypeStruct((B, D), out_dtype),
        grid=(grid,),
        in_specs=[
            pl.BlockSpec((TB, D), lambda i: (i, 0)),        # pipelined per tile
            pl.BlockSpec((L, D, D), lambda i: (0, 0, 0)),   # VMEM-resident
            pl.BlockSpec((L, 1, D), lambda i: (0, 0, 0)),   # VMEM-resident
        ],
        out_specs=pl.BlockSpec((TB, D), lambda i: (i, 0)),
        compiler_params=pltpu.CompilerParams(
            dimension_semantics=("parallel",),
            vmem_limit_bytes=vmem_limit),
    )(x, w, b)


def _reference(x, weights, biases, lr_mul=0.01):
    """Pure-JAX reference mirroring the PyTorch forward (PyTorch weight layout)."""
    D = x.shape[-1]
    scale = (1.0 / math.sqrt(D)) * lr_mul
    h = x * jax.lax.rsqrt(jnp.mean(x * x, axis=-1, keepdims=True) + 1e-8)
    for l in range(weights.shape[0]):
        y = h @ (weights[l] * scale).T
        y = y + biases[l] * lr_mul
        h = jnp.where(y >= 0.0, y, 0.2 * y) * _SQRT2
    return h


if __name__ == "__main__":
    style_dim = 32
    n_layers = 4
    lr_mul = 0.01

    key = jax.random.PRNGKey(0)
    kx, kw, kx2 = jax.random.split(key, 3)

    # PyTorch init: weight = randn(out, in) / lr_mul ; bias = zeros(out)
    weights = (jax.random.normal(kw, (n_layers, style_dim, style_dim),
                                 dtype=jnp.float32) / lr_mul)
    biases = jnp.zeros((n_layers, style_dim), dtype=jnp.float32)

    # --- f32 path, tight tolerance (batch=2, single full-extent tile) -------
    x = jax.random.normal(kx, (2, style_dim), dtype=jnp.float32)
    w32, b32 = prepare_params(weights, biases, lr_mul=lr_mul,
                              param_dtype=jnp.float32)
    out = jax.block_until_ready(mapping_network(x, w32, b32))
    ref = _reference(x, weights, biases, lr_mul=lr_mul)
    assert out.shape == (2, style_dim)
    assert jnp.allclose(out, ref, atol=1e-5, rtol=1e-5), "f32 mismatch"

    # --- ragged-grid path (B=19 with TB=8 -> partial last tile) -------------
    x2 = jax.random.normal(kx2, (19, style_dim), dtype=jnp.float32)
    out2 = jax.block_until_ready(mapping_network(x2, w32, b32, block_b=8))
    ref2 = _reference(x2, weights, biases, lr_mul=lr_mul)
    assert out2.shape == (19, style_dim)
    assert jnp.allclose(out2, ref2, atol=1e-5, rtol=1e-5), "ragged mismatch"

    # --- bf16 production path (bf16 x + weights, f32 accumulation) ----------
    wbf, bbf = prepare_params(weights, biases, lr_mul=lr_mul,
                              param_dtype=jnp.bfloat16)
    out3 = jax.block_until_ready(
        mapping_network(x.astype(jnp.bfloat16), wbf, bbf,
                        out_dtype=jnp.float32))
    assert out3.shape == (2, style_dim)
    assert bool(jnp.all(jnp.isfinite(out3)))
    assert jnp.allclose(out3, ref, atol=1e-1, rtol=1e-1), "bf16 mismatch"

    print("KERNEL_OK")
</pallas_src>

<mosaic_0001>
module attributes {stable_mosaic.version = 11 : i64} {
  func.func @_mapping_kernel(%arg0: i32, %arg1: memref<2x32xf32, #tpu.memory_space<vmem>>, %arg2: memref<4x32x32xf32, #tpu.memory_space<vmem>>, %arg3: memref<4x1x32xf32, #tpu.memory_space<vmem>>, %arg4: memref<2x32xf32, #tpu.memory_space<vmem>>) attributes {dimension_semantics = [#tpu.dimension_semantics<parallel>], iteration_bounds = array<i64: 1>, scalar_prefetch = 0 : i64, scratch_operands = 0 : i64, tpu.core_type = #tpu.core_type<tc>, window_params = [{transform_indices = @transform_0, window_bounds = array<i64: 2, 32>}, {pipeline_mode = #tpu.pipeline_mode<synchronous>, transform_indices = @transform_1, window_bounds = array<i64: 4, 32, 32>}, {pipeline_mode = #tpu.pipeline_mode<synchronous>, transform_indices = @transform_2, window_bounds = array<i64: 4, 1, 32>}, {transform_indices = @transform_3, window_bounds = array<i64: 2, 32>}]} {
    %c0 = arith.constant 0 : index
    %c0_0 = arith.constant 0 : index
    %0 = vector.load %arg1[%c0, %c0_0] : memref<2x32xf32, #tpu.memory_space<vmem>>, vector<2x32xf32>
    %1 = arith.mulf %0, %0 : vector<2x32xf32>
    %cst = arith.constant dense<0.000000e+00> : vector<2xf32>
    %2 = vector.multi_reduction <add>, %1, %cst [1] : vector<2x32xf32> to vector<2xf32>
    %3 = vector.shape_cast %2 : vector<2xf32> to vector<2x1xf32>
    %cst_1 = arith.constant 3.200000e+01 : f32
    %4 = vector.broadcast %cst_1 : f32 to vector<2x1xf32>
    %5 = arith.divf %3, %4 : vector<2x1xf32>
    %cst_2 = arith.constant 9.99999993E-9 : f32
    %6 = vector.broadcast %cst_2 : f32 to vector<2x1xf32>
    %7 = arith.addf %5, %6 : vector<2x1xf32>
    %8 = math.rsqrt %7 : vector<2x1xf32>
    %9 = vector.broadcast %8 : vector<2x1xf32> to vector<2x32xf32>
    %10 = arith.mulf %0, %9 : vector<2x32xf32>
    %c0_3 = arith.constant 0 : index
    %c0_4 = arith.constant 0 : index
    %c0_5 = arith.constant 0 : index
    %11 = vector.load %arg2[%c0_3, %c0_4, %c0_5] : memref<4x32x32xf32, #tpu.memory_space<vmem>>, vector<1x32x32xf32>
    %12 = vector.shape_cast %11 : vector<1x32x32xf32> to vector<32x32xf32>
    %cst_6 = arith.constant dense<0.000000e+00> : vector<2x32xf32>
    %13 = tpu.matmul %10, %12, %cst_6 {dimension_numbers = #tpu.dot_dimension_numbers<[1], [0], [0], [1], [0, 0, 1, 1], [], []>} : vector<2x32xf32>, vector<32x32xf32>, vector<2x32xf32> -> vector<2x32xf32>
    %c0_7 = arith.constant 0 : index
    %c0_8 = arith.constant 0 : index
    %c0_9 = arith.constant 0 : index
    %14 = vector.load %arg3[%c0_7, %c0_8, %c0_9] : memref<4x1x32xf32, #tpu.memory_space<vmem>>, vector<1x1x32xf32>
    %15 = vector.shape_cast %14 : vector<1x1x32xf32> to vector<1x32xf32>
    %16 = vector.broadcast %15 : vector<1x32xf32> to vector<2x32xf32>
    %17 = arith.addf %13, %16 : vector<2x32xf32>
    %cst_10 = arith.constant 0.000000e+00 : f32
    %18 = vector.broadcast %cst_10 : f32 to vector<2x32xf32>
    %19 = arith.cmpf oge, %17, %18 : vector<2x32xf32>
    %cst_11 = arith.constant 1.41421354 : f32
    %cst_12 = arith.constant 0.282842726 : f32
    %20 = vector.broadcast %cst_11 : f32 to vector<2x32xf32>
    %21 = vector.broadcast %cst_12 : f32 to vector<2x32xf32>
    %22 = arith.select %19, %20, %21 : vector<2x32xi1>, vector<2x32xf32>
    %23 = arith.mulf %17, %22 : vector<2x32xf32>
    %c1 = arith.constant 1 : index
    %c0_13 = arith.constant 0 : index
    %c0_14 = arith.constant 0 : index
    %24 = vector.load %arg2[%c1, %c0_13, %c0_14] : memref<4x32x32xf32, #tpu.memory_space<vmem>>, vector<1x32x32xf32>
    %25 = vector.shape_cast %24 : vector<1x32x32xf32> to vector<32x32xf32>
    %cst_15 = arith.constant dense<0.000000e+00> : vector<2x32xf32>
    %26 = tpu.matmul %23, %25, %cst_15 {dimension_numbers = #tpu.dot_dimension_numbers<[1], [0], [0], [1], [0, 0, 1, 1], [], []>} : vector<2x32xf32>, vector<32x32xf32>, vector<2x32xf32> -> vector<2x32xf32>
    %c1_16 = arith.constant 1 : index
    %c0_17 = arith.constant 0 : index
    %c0_18 = arith.constant 0 : index
    %27 = vector.load %arg3[%c1_16, %c0_17, %c0_18] : memref<4x1x32xf32, #tpu.memory_space<vmem>>, vector<1x1x32xf32>
    %28 = vector.shape_cast %27 : vector<1x1x32xf32> to vector<1x32xf32>
    %29 = vector.broadcast %28 : vector<1x32xf32> to vector<2x32xf32>
    %30 = arith.addf %26, %29 : vector<2x32xf32>
    %cst_19 = arith.constant 0.000000e+00 : f32
    %31 = vector.broadcast %cst_19 : f32 to vector<2x32xf32>
    %32 = arith.cmpf oge, %30, %31 : vector<2x32xf32>
    %cst_20 = arith.constant 1.41421354 : f32
    %cst_21 = arith.constant 0.282842726 : f32
    %33 = vector.broadcast %cst_20 : f32 to vector<2x32xf32>
    %34 = vector.broadcast %cst_21 : f32 to vector<2x32xf32>
    %35 = arith.select %32, %33, %34 : vector<2x32xi1>, vector<2x32xf32>
    %36 = arith.mulf %30, %35 : vector<2x32xf32>
    %c2 = arith.constant 2 : index
    %c0_22 = arith.constant 0 : index
    %c0_23 = arith.constant 0 : index
    %37 = vector.load %arg2[%c2, %c0_22, %c0_23] : memref<4x32x32xf32, #tpu.memory_space<vmem>>, vector<1x32x32xf32>
    %38 = vector.shape_cast %37 : vector<1x32x32xf32> to vector<32x32xf32>
    %cst_24 = arith.constant dense<0.000000e+00> : vector<2x32xf32>
    %39 = tpu.matmul %36, %38, %cst_24 {dimension_numbers = #tpu.dot_dimension_numbers<[1], [0], [0], [1], [0, 0, 1, 1], [], []>} : vector<2x32xf32>, vector<32x32xf32>, vector<2x32xf32> -> vector<2x32xf32>
    %c2_25 = arith.constant 2 : index
    %c0_26 = arith.constant 0 : index
    %c0_27 = arith.constant 0 : index
    %40 = vector.load %arg3[%c2_25, %c0_26, %c0_27] : memref<4x1x32xf32, #tpu.memory_space<vmem>>, vector<1x1x32xf32>
    %41 = vector.shape_cast %40 : vector<1x1x32xf32> to vector<1x32xf32>
    %42 = vector.broadcast %41 : vector<1x32xf32> to vector<2x32xf32>
    %43 = arith.addf %39, %42 : vector<2x32xf32>
    %cst_28 = arith.constant 0.000000e+00 : f32
    %44 = vector.broadcast %cst_28 : f32 to vector<2x32xf32>
    %45 = arith.cmpf oge, %43, %44 : vector<2x32xf32>
    %cst_29 = arith.constant 1.41421354 : f32
    %cst_30 = arith.constant 0.282842726 : f32
    %46 = vector.broadcast %cst_29 : f32 to vector<2x32xf32>
    %47 = vector.broadcast %cst_30 : f32 to vector<2x32xf32>
    %48 = arith.select %45, %46, %47 : vector<2x32xi1>, vector<2x32xf32>
    %49 = arith.mulf %43, %48 : vector<2x32xf32>
    %c3 = arith.constant 3 : index
    %c0_31 = arith.constant 0 : index
    %c0_32 = arith.constant 0 : index
    %50 = vector.load %arg2[%c3, %c0_31, %c0_32] : memref<4x32x32xf32, #tpu.memory_space<vmem>>, vector<1x32x32xf32>
    %51 = vector.shape_cast %50 : vector<1x32x32xf32> to vector<32x32xf32>
    %cst_33 = arith.constant dense<0.000000e+00> : vector<2x32xf32>
    %52 = tpu.matmul %49, %51, %cst_33 {dimension_numbers = #tpu.dot_dimension_numbers<[1], [0], [0], [1], [0, 0, 1, 1], [], []>} : vector<2x32xf32>, vector<32x32xf32>, vector<2x32xf32> -> vector<2x32xf32>
    %c3_34 = arith.constant 3 : index
    %c0_35 = arith.constant 0 : index
    %c0_36 = arith.constant 0 : index
    %53 = vector.load %arg3[%c3_34, %c0_35, %c0_36] : memref<4x1x32xf32, #tpu.memory_space<vmem>>, vector<1x1x32xf32>
    %54 = vector.shape_cast %53 : vector<1x1x32xf32> to vector<1x32xf32>
    %55 = vector.broadcast %54 : vector<1x32xf32> to vector<2x32xf32>
    %56 = arith.addf %52, %55 : vector<2x32xf32>
    %cst_37 = arith.constant 0.000000e+00 : f32
    %57 = vector.broadcast %cst_37 : f32 to vector<2x32xf32>
    %58 = arith.cmpf oge, %56, %57 : vector<2x32xf32>
    %cst_38 = arith.constant 1.41421354 : f32
    %cst_39 = arith.constant 0.282842726 : f32
    %59 = vector.broadcast %cst_38 : f32 to vector<2x32xf32>
    %60 = vector.broadcast %cst_39 : f32 to vector<2x32xf32>
    %61 = arith.select %58, %59, %60 : vector<2x32xi1>, vector<2x32xf32>
    %62 = arith.mulf %56, %61 : vector<2x32xf32>
    %c0_40 = arith.constant 0 : index
    %c0_41 = arith.constant 0 : index
    %63 = vector.load %arg4[%c0_40, %c0_41] : memref<2x32xf32, #tpu.memory_space<vmem>>, vector<2x32xf32>
    tpu.vector_store %arg4[%c0_40, %c0_41], %62 {strides = array<i32>} : memref<2x32xf32, #tpu.memory_space<vmem>>, vector<2x32xf32>,
    return
  }
  func.func @transform_0(%arg0: i32) -> (i32, i32) {
    %c0_i32 = arith.constant 0 : i32
    %c0_i32_0 = arith.constant 0 : i32
    return %arg0, %c0_i32 : i32, i32
  }
  func.func @transform_1(%arg0: i32) -> (i32, i32, i32) {
    %c0_i32 = arith.constant 0 : i32
    %c0_i32_0 = arith.constant 0 : i32
    %c0_i32_1 = arith.constant 0 : i32
    %c0_i32_2 = arith.constant 0 : i32
    return %c0_i32, %c0_i32_0, %c0_i32_1 : i32, i32, i32
  }
  func.func @transform_2(%arg0: i32) -> (i32, i32, i32) {
    %c0_i32 = arith.constant 0 : i32
    %c0_i32_0 = arith.constant 0 : i32
    %c0_i32_1 = arith.constant 0 : i32
    %c0_i32_2 = arith.constant 0 : i32
    return %c0_i32, %c0_i32_0, %c0_i32_1 : i32, i32, i32
  }
  func.func @transform_3(%arg0: i32) -> (i32, i32) {
    %c0_i32 = arith.constant 0 : i32
    %c0_i32_0 = arith.constant 0 : i32
    return %arg0, %c0_i32 : i32, i32
  }
}

</mosaic_0001>

<llo_original>
// kernel: tpu_custom_call.1
$region0: #{tpu_custom_call.1}
  #allocation0 [shape = 'u32[]', space=smem, size = 0x4, offset = 0x4, fixed_abs, tag = 'smem constant byte address 0x4 - core index']
  #allocation1 [shape = 'u32[144,128]{1,0:T(1,128)}', space=vmem, size = 0x12000, scoped, tag = 'internal scratch']
  %s0 = inlined_call_operand.hbm [shape: f32[2,32], index: 0, kind: input, shape index: {}]
  %s1 = inlined_call_operand.hbm [shape: f32[4,32,32], index: 1, kind: input, shape index: {}]
  %s2 = inlined_call_operand.hbm [shape: f32[4,1,32], index: 2, kind: input, shape index: {}]
  %s3 = inlined_call_operand.hbm [shape: f32[2,32], index: 3, kind: output, shape index: {}]
  %s4 = sld [smem:[#allocation0]]
  $region34: #{tpu_custom_call.1} parent=0
    _
  %s6 = ssub.s32 1, %s4
  %s7 = scalar_select 0, %s6, %s4
  $region1: #{tpu_custom_call.1} parent=0
    #allocation2 [shape = 'u8[1024]{0}', space=vmem, size = 0x400, scoped, tag = 'input window, operand 0, single buffered']
    #allocation3 [shape = 's32[1]{0}', space=sflag, size = 0x4, scoped, tag = 'scoped memory for tpu_custom_call.1']
    #allocation4 [shape = 's32[1]{0}', space=sflag, size = 0x4, scoped, tag = 'scoped memory for tpu_custom_call.1']
    #allocation5 [shape = 'u8[65536]{0}', space=vmem, size = 0x10000, scoped, tag = 'input window, operand 1, single buffered']
    #allocation6 [shape = 's32[1]{0}', space=sflag, size = 0x4, scoped, tag = 'scoped memory for tpu_custom_call.1']
    #allocation7 [shape = 'u8[2048]{0}', space=vmem, size = 0x800, scoped, tag = 'input window, operand 2, single buffered']
    #allocation8 [shape = 'u8[1024]{0}', space=vmem, size = 0x400, scoped, tag = 'output window, operand 0, single buffered']
    %8 = vsyncpa [#allocation3], 0
    %9 = vsyncpa [#allocation6], 0
    %10 = vsyncpa [#allocation4], 0
    // Predicated region
    $region2: #{tpu_custom_call.1} parent=1 // pred_check
      _
    $region3: #{tpu_custom_call.1} parent=1 // pred_check_branch
      %12 = sbr.rel (0) target = $region5
    $region4: #{tpu_custom_call.1} parent=1 // pred_region
      %s14 = ssub.s32 32, 32
      %15 = vsyncadd [#allocation3], %s14
      %s17 = sshll.u32 [#allocation2], 4
      %s18 = int_to_ptr.vmem [resolvable:$true] %s17
      %20 = dma.hbm_to_vmem [thread:$0]  %s0, 32, %s18, [#allocation3]
    $region5: #{tpu_custom_call.1} parent=1 // pred_fallthru
      _
    // Predicated region
    $region6: #{tpu_custom_call.1} parent=1 // pred_check
      _
    $region7: #{tpu_custom_call.1} parent=1 // pred_check_branch
      %22 = sbr.rel (0) target = $region9
    $region8: #{tpu_custom_call.1} parent=1 // pred_region
      %s24 = ssub.s32 2048, 2048
      %25 = vsyncadd [#allocation6], %s24
      %s26 = sshll.u32 [#allocation5], 4
      %s27 = int_to_ptr.vmem [resolvable:$true] %s26
      %32 = dma.hbm_to_vmem [thread:$0]  %s1, 2048, %s27, [#allocation6], 128, 128, 8
    $region9: #{tpu_custom_call.1} parent=1 // pred_fallthru
      _
    // Predicated region
    $region10: #{tpu_custom_call.1} parent=1 // pred_check
      _
    $region11: #{tpu_custom_call.1} parent=1 // pred_check_branch
      %34 = sbr.rel (0) target = $region13
    $region12: #{tpu_custom_call.1} parent=1 // pred_region
      %s36 = ssub.s32 64, 64
      %37 = vsyncadd [#allocation6], %s36
      %s38 = sshll.u32 [#allocation7], 4
      %s39 = int_to_ptr.vmem [resolvable:$true] %s38
      %44 = dma.hbm_to_vmem [thread:$0]  %s2, 64, %s39, [#allocation6], 16, 16, 1
    $region13: #{tpu_custom_call.1} parent=1 // pred_fallthru
      _
    // Predicated region
    $region14: #{tpu_custom_call.1} parent=1 // pred_check
      _
    $region15: #{tpu_custom_call.1} parent=1 // pred_check_branch
      %46 = sbr.rel (0) target = $region17
    $region16: #{tpu_custom_call.1} parent=1 // pred_region
      %47 = dma.done [#allocation3], 32
    $region17: #{tpu_custom_call.1} parent=1 // pred_fallthru
      _
    // Predicated region
    $region18: #{tpu_custom_call.1} parent=1 // pred_check
      _
    $region19: #{tpu_custom_call.1} parent=1 // pred_check_branch
      %49 = sbr.rel (0) target = $region21
    $region20: #{tpu_custom_call.1} parent=1 // pred_region
      %50 = dma.done [#allocation6], 2048
    $region21: #{tpu_custom_call.1} parent=1 // pred_fallthru
      _
    // Predicated region
    $region22: #{tpu_custom_call.1} parent=1 // pred_check
      _
    $region23: #{tpu_custom_call.1} parent=1 // pred_check_branch
      %52 = sbr.rel (0) target = $region25
    $region24: #{tpu_custom_call.1} parent=1 // pred_region
      %53 = dma.done [#allocation6], 64
    $region25: #{tpu_custom_call.1} parent=1 // pred_fallthru
      _
    %v54 = vld [vmem:[#allocation2] sm:$0x3]
    %v55 = vmul.f32 %v54, %v54
    %vm56 = vcmask 254976
    %v57 = vsel %vm56, %v55, 0.0
    %58 = vadd.xlane.f32.xlu0 %v57
    %v59 = vpop.xlane.xlu0 %58
    %v60 = vrcp.pop 32.0
    %v61 = vmul.f32 %v59, %v60
    %v62 = vadd.f32 %v61, 1e-08
    %v63 = vrsqrt.pop %v62
    %v64 = vmul.f32 %v54, %v63
    %v65 = vld [vmem:[#allocation5] sm:$0xff]
    %v66 = vld [vmem:[#allocation5 + $0x8] sm:$0xff]
    %v67 = vld [vmem:[#allocation5 + $0x10] sm:$0xff]
    %v68 = vld [vmem:[#allocation5 + $0x18] sm:$0xff]
    %v69 = vld [vmem:[#allocation7] sm:$0x1]
    %v71 = vlaneseq
    %v72 = vshrl.u32 %v71, 7
    %v73 = vsub.s32 0, %v72
    %v74 = vrot.slane %v69, %v73
    %vm76 = vcmask 261120
    %v78 = vsel %vm76, %v64, 0
    %80 = vmatprep.subr.mxu0 0.0
    %81 = vmatpush1.msra.mxu0 0.0
    %82 = vmatprep.subr.mxu0 0.0
    %83 = vmatpush1.msra.mxu0 0.0
    %84 = vmatprep.subr.mxu0 0.0
    %85 = vmatpush1.msra.mxu0 0.0
    %86 = vmatprep.subr.mxu0 0.0
    %87 = vmatpush1.msra.mxu0 0.0
    %88 = vmatprep.subr.mxu0 0.0
    %89 = vmatpush1.msra.mxu0 0.0
    %90 = vmatprep.subr.mxu0 0.0
    %91 = vmatpush1.msra.mxu0 0.0
    %92 = vmatprep.subr.mxu0 0.0
    %93 = vmatpush1.msra.mxu0 0.0
    %94 = vmatprep.subr.mxu0 0.0
    %95 = vmatpush1.msra.mxu0 0.0
    %96 = vmatprep.subr.mxu0 0.0
    %97 = vmatpush1.msra.mxu0 0.0
    %98 = vmatprep.subr.mxu0 0.0
    %99 = vmatpush1.msra.mxu0 0.0
    %100 = vmatprep.subr.mxu0 0.0
    %101 = vmatpush1.msra.mxu0 0.0
    %102 = vmatprep.subr.mxu0 0.0
    %103 = vmatpush1.msra.mxu0 0.0
    %104 = vmatprep.subr.mxu0 0.0
    %105 = vmatpush1.msra.mxu0 %v68
    %106 = vmatprep.subr.mxu0 0.0
    %107 = vmatpush1.msra.mxu0 %v67
    %108 = vmatprep.subr.mxu0 0.0
    %109 = vmatpush1.msra.mxu0 %v66
    %110 = vmatprep.subr.mxu0 0.0
    %111 = vmatpush1.msra.mxu0 %v65
    %112 = vmatprep.subr.mxu0 0.0
    %113 = vmatpush2.msra.mxu0 0.0
    %114 = vmatprep.subr.mxu0 0.0
    %115 = vmatpush2.msra.mxu0 0.0
    %116 = vmatprep.subr.mxu0 0.0
    %117 = vmatpush2.msra.mxu0 0.0
    %118 = vmatprep.subr.mxu0 0.0
    %119 = vmatpush2.msra.mxu0 0.0
    %120 = vmatprep.subr.mxu0 0.0
    %121 = vmatpush2.msra.mxu0 0.0
    %122 = vmatprep.subr.mxu0 0.0
    %123 = vmatpush2.msra.mxu0 0.0
    %124 = vmatprep.subr.mxu0 0.0
    %125 = vmatpush2.msra.mxu0 0.0
    %126 = vmatprep.subr.mxu0 0.0
    %127 = vmatpush2.msra.mxu0 0.0
    %128 = vmatprep.subr.mxu0 0.0
    %129 = vmatpush2.msra.mxu0 0.0
    %130 = vmatprep.subr.mxu0 0.0
    %131 = vmatpush2.msra.mxu0 0.0
    %132 = vmatprep.subr.mxu0 0.0
    %133 = vmatpush2.msra.mxu0 0.0
    %134 = vmatprep.subr.mxu0 0.0
    %135 = vmatpush2.msra.mxu0 0.0
    %136 = vmatprep.subr.mxu0 0.0
    %137 = vmatpush2.msra.mxu0 0.0
    %138 = vmatprep.subr.mxu0 0.0
    %139 = vmatpush2.msra.mxu0 0.0
    %140 = vmatprep.subr.mxu0 0.0
    %141 = vmatpush2.msra.mxu0 0.0
    %142 = vmatprep.subr.mxu0 0.0
    %143 = vmatpush2.msra.mxu0 0.0
    %144 = vmatprep.mubr.f32.mxu0 0.0
    %145 = vmatmul.mubr.f32.gmra.mxu0 %v78
    %v146 = vpop.f32.mrf.mxu0
    %v147 = vadd.f32 %v74, %v146
    %v148 = vpop.f32.mrf.mxu0
    %149 = vdwg.mxu0
    %vm150 = vcmp.ge.f32.partialorder %v147, 0.0
    %v151 = vsel %vm150, 1.4142135, 0.28284273
    %v152 = vmul.f32 %v147, %v151
    %s153 = scalar_lea.vmem [#allocation5], 32
    %v154 = vld [vmem:[%s153] sm:$0xff]
    %v155 = vld [vmem:[%s153 + $0x8] sm:$0xff]
    %v156 = vld [vmem:[%s153 + $0x10] sm:$0xff]
    %v157 = vld [vmem:[%s153 + $0x18] sm:$0xff]
    %s158 = scalar_lea.vmem [#allocation7], 1
    %v159 = vld [vmem:[%s158] sm:$0x1]
    %v161 = vlaneseq
    %v162 = vshrl.u32 %v161, 7
    %v163 = vsub.s32 0, %v162
    %v164 = vrot.slane %v159, %v163
    %v167 = vsel %vm76, %v152, 0
    %169 = vmatprep.subr.mxu0 0.0
    %170 = vmatpush1.msra.mxu0 0.0
    %171 = vmatprep.subr.mxu0 0.0
    %172 = vmatpush1.msra.mxu0 0.0
    %173 = vmatprep.subr.mxu0 0.0
    %174 = vmatpush1.msra.mxu0 0.0
    %175 = vmatprep.subr.mxu0 0.0
    %176 = vmatpush1.msra.mxu0 0.0
    %177 = vmatprep.subr.mxu0 0.0
    %178 = vmatpush1.msra.mxu0 0.0
    %179 = vmatprep.subr.mxu0 0.0
    %180 = vmatpush1.msra.mxu0 0.0
    %181 = vmatprep.subr.mxu0 0.0
    %182 = vmatpush1.msra.mxu0 0.0
    %183 = vmatprep.subr.mxu0 0.0
    %184 = vmatpush1.msra.mxu0 0.0
    %185 = vmatprep.subr.mxu0 0.0
    %186 = vmatpush1.msra.mxu0 0.0
    %187 = vmatprep.subr.mxu0 0.0
    %188 = vmatpush1.msra.mxu0 0.0
    %189 = vmatprep.subr.mxu0 0.0
    %190 = vmatpush1.msra.mxu0 0.0
    %191 = vmatprep.subr.mxu0 0.0
    %192 = vmatpush1.msra.mxu0 0.0
    %193 = vmatprep.subr.mxu0 0.0
    %194 = vmatpush1.msra.mxu0 %v157
    %195 = vmatprep.subr.mxu0 0.0
    %196 = vmatpush1.msra.mxu0 %v156
    %197 = vmatprep.subr.mxu0 0.0
    %198 = vmatpush1.msra.mxu0 %v155
    %199 = vmatprep.subr.mxu0 0.0
    %200 = vmatpush1.msra.mxu0 %v154
    %201 = vmatprep.subr.mxu0 0.0
    %202 = vmatpush2.msra.mxu0 0.0
    %203 = vmatprep.subr.mxu0 0.0
    %204 = vmatpush2.msra.mxu0 0.0
    %205 = vmatprep.subr.mxu0 0.0
    %206 = vmatpush2.msra.mxu0 0.0
    %207 = vmatprep.subr.mxu0 0.0
    %208 = vmatpush2.msra.mxu0 0.0
    %209 = vmatprep.subr.mxu0 0.0
    %210 = vmatpush2.msra.mxu0 0.0
    %211 = vmatprep.subr.mxu0 0.0
    %212 = vmatpush2.msra.mxu0 0.0
    %213 = vmatprep.subr.mxu0 0.0
    %214 = vmatpush2.msra.mxu0 0.0
    %215 = vmatprep.subr.mxu0 0.0
    %216 = vmatpush2.msra.mxu0 0.0
    %217 = vmatprep.subr.mxu0 0.0
    %218 = vmatpush2.msra.mxu0 0.0
    %219 = vmatprep.subr.mxu0 0.0
    %220 = vmatpush2.msra.mxu0 0.0
    %221 = vmatprep.subr.mxu0 0.0
    %222 = vmatpush2.msra.mxu0 0.0
    %223 = vmatprep.subr.mxu0 0.0
    %224 = vmatpush2.msra.mxu0 0.0
    %225 = vmatprep.subr.mxu0 0.0
    %226 = vmatpush2.msra.mxu0 0.0
    %227 = vmatprep.subr.mxu0 0.0
    %228 = vmatpush2.msra.mxu0 0.0
    %229 = vmatprep.subr.mxu0 0.0
    %230 = vmatpush2.msra.mxu0 0.0
    %231 = vmatprep.subr.mxu0 0.0
    %232 = vmatpush2.msra.mxu0 0.0
    %233 = vmatprep.mubr.f32.mxu0 0.0
    %234 = vmatmul.mubr.f32.gmra.mxu0 %v167
    %v235 = vpop.f32.mrf.mxu0
    %v236 = vadd.f32 %v164, %v235
    %v237 = vpop.f32.mrf.mxu0
    %238 = vdwg.mxu0
    %vm239 = vcmp.ge.f32.partialorder %v236, 0.0
    %v240 = vsel %vm239, 1.4142135, 0.28284273
    %v241 = vmul.f32 %v236, %v240
    %s242 = scalar_lea.vmem [#allocation5], 64
    %v243 = vld [vmem:[%s242] sm:$0xff]
    %v244 = vld [vmem:[%s242 + $0x8] sm:$0xff]
    %v245 = vld [vmem:[%s242 + $0x10] sm:$0xff]
    %v246 = vld [vmem:[%s242 + $0x18] sm:$0xff]
    %s247 = scalar_lea.vmem [#allocation7], 2
    %v248 = vld [vmem:[%s247] sm:$0x1]
    %v250 = vlaneseq
    %v251 = vshrl.u32 %v250, 7
    %v252 = vsub.s32 0, %v251
    %v253 = vrot.slane %v248, %v252
    %v256 = vsel %vm76, %v241, 0
    %258 = vmatprep.subr.mxu0 0.0
    %259 = vmatpush1.msra.mxu0 0.0
    %260 = vmatprep.subr.mxu0 0.0
    %261 = vmatpush1.msra.mxu0 0.0
    %262 = vmatprep.subr.mxu0 0.0
    %263 = vmatpush1.msra.mxu0 0.0
    %264 = vmatprep.subr.mxu0 0.0
    %265 = vmatpush1.msra.mxu0 0.0
    %266 = vmatprep.subr.mxu0 0.0
    %267 = vmatpush1.msra.mxu0 0.0
    %268 = vmatprep.subr.mxu0 0.0
    %269 = vmatpush1.msra.mxu0 0.0
    %270 = vmatprep.subr.mxu0 0.0
    %271 = vmatpush1.msra.mxu0 0.0
    %272 = vmatprep.subr.mxu0 0.0
    %273 = vmatpush1.msra.mxu0 0.0
    %274 = vmatprep.subr.mxu0 0.0
    %275 = vmatpush1.msra.mxu0 0.0
    %276 = vmatprep.subr.mxu0 0.0
    %277 = vmatpush1.msra.mxu0 0.0
    %278 = vmatprep.subr.mxu0 0.0
    %279 = vmatpush1.msra.mxu0 0.0
    %280 = vmatprep.subr.mxu0 0.0
    %281 = vmatpush1.msra.mxu0 0.0
    %282 = vmatprep.subr.mxu0 0.0
    %283 = vmatpush1.msra.mxu0 %v246
    %284 = vmatprep.subr.mxu0 0.0
    %285 = vmatpush1.msra.mxu0 %v245
    %286 = vmatprep.subr.mxu0 0.0
    %287 = vmatpush1.msra.mxu0 %v244
    %288 = vmatprep.subr.mxu0 0.0
    %289 = vmatpush1.msra.mxu0 %v243
    %290 = vmatprep.subr.mxu0 0.0
    %291 = vmatpush2.msra.mxu0 0.0
    %292 = vmatprep.subr.mxu0 0.0
    %293 = vmatpush2.msra.mxu0 0.0
    %294 = vmatprep.subr.mxu0 0.0
    %295 = vmatpush2.msra.mxu0 0.0
    %296 = vmatprep.subr.mxu0 0.0
    %297 = vmatpush2.msra.mxu0 0.0
    %298 = vmatprep.subr.mxu0 0.0
    %299 = vmatpush2.msra.mxu0 0.0
    %300 = vmatprep.subr.mxu0 0.0
    %301 = vmatpush2.msra.mxu0 0.0
    %302 = vmatprep.subr.mxu0 0.0
    %303 = vmatpush2.msra.mxu0 0.0
    %304 = vmatprep.subr.mxu0 0.0
    %305 = vmatpush2.msra.mxu0 0.0
    %306 = vmatprep.subr.mxu0 0.0
    %307 = vmatpush2.msra.mxu0 0.0
    %308 = vmatprep.subr.mxu0 0.0
    %309 = vmatpush2.msra.mxu0 0.0
    %310 = vmatprep.subr.mxu0 0.0
    %311 = vmatpush2.msra.mxu0 0.0
    %312 = vmatprep.subr.mxu0 0.0
    %313 = vmatpush2.msra.mxu0 0.0
    %314 = vmatprep.subr.mxu0 0.0
    %315 = vmatpush2.msra.mxu0 0.0
    %316 = vmatprep.subr.mxu0 0.0
    %317 = vmatpush2.msra.mxu0 0.0
    %318 = vmatprep.subr.mxu0 0.0
    %319 = vmatpush2.msra.mxu0 0.0
    %320 = vmatprep.subr.mxu0 0.0
    %321 = vmatpush2.msra.mxu0 0.0
    %322 = vmatprep.mubr.f32.mxu0 0.0
    %323 = vmatmul.mubr.f32.gmra.mxu0 %v256
    %v324 = vpop.f32.mrf.mxu0
    %v325 = vadd.f32 %v253, %v324
    %v326 = vpop.f32.mrf.mxu0
    %327 = vdwg.mxu0
    %vm328 = vcmp.ge.f32.partialorder %v325, 0.0
    %v329 = vsel %vm328, 1.4142135, 0.28284273
    %v330 = vmul.f32 %v325, %v329
    %s331 = scalar_lea.vmem [#allocation5], 96
    %v332 = vld [vmem:[%s331] sm:$0xff]
    %v333 = vld [vmem:[%s331 + $0x8] sm:$0xff]
    %v334 = vld [vmem:[%s331 + $0x10] sm:$0xff]
    %v335 = vld [vmem:[%s331 + $0x18] sm:$0xff]
    %s336 = scalar_lea.vmem [#allocation7], 3
    %v337 = vld [vmem:[%s336] sm:$0x1]
    %v339 = vlaneseq
    %v340 = vshrl.u32 %v339, 7
    %v341 = vsub.s32 0, %v340
    %v342 = vrot.slane %v337, %v341
    %v345 = vsel %vm76, %v330, 0
    %347 = vmatprep.subr.mxu0 0.0
    %348 = vmatpush1.msra.mxu0 0.0
    %349 = vmatprep.subr.mxu0 0.0
    %350 = vmatpush1.msra.mxu0 0.0
    %351 = vmatprep.subr.mxu0 0.0
    %352 = vmatpush1.msra.mxu0 0.0
    %353 = vmatprep.subr.mxu0 0.0
    %354 = vmatpush1.msra.mxu0 0.0
    %355 = vmatprep.subr.mxu0 0.0
    %356 = vmatpush1.msra.mxu0 0.0
    %357 = vmatprep.subr.mxu0 0.0
    %358 = vmatpush1.msra.mxu0 0.0
    %359 = vmatprep.subr.mxu0 0.0
    %360 = vmatpush1.msra.mxu0 0.0
    %361 = vmatprep.subr.mxu0 0.0
    %362 = vmatpush1.msra.mxu0 0.0
    %363 = vmatprep.subr.mxu0 0.0
    %364 = vmatpush1.msra.mxu0 0.0
    %365 = vmatprep.subr.mxu0 0.0
    %366 = vmatpush1.msra.mxu0 0.0
    %367 = vmatprep.subr.mxu0 0.0
    %368 = vmatpush1.msra.mxu0 0.0
    %369 = vmatprep.subr.mxu0 0.0
    %370 = vmatpush1.msra.mxu0 0.0
    %371 = vmatprep.subr.mxu0 0.0
    %372 = vmatpush1.msra.mxu0 %v335
    %373 = vmatprep.subr.mxu0 0.0
    %374 = vmatpush1.msra.mxu0 %v334
    %375 = vmatprep.subr.mxu0 0.0
    %376 = vmatpush1.msra.mxu0 %v333
    %377 = vmatprep.subr.mxu0 0.0
    %378 = vmatpush1.msra.mxu0 %v332
    %379 = vmatprep.subr.mxu0 0.0
    %380 = vmatpush2.msra.mxu0 0.0
    %381 = vmatprep.subr.mxu0 0.0
    %382 = vmatpush2.msra.mxu0 0.0
    %383 = vmatprep.subr.mxu0 0.0
    %384 = vmatpush2.msra.mxu0 0.0
    %385 = vmatprep.subr.mxu0 0.0
    %386 = vmatpush2.msra.mxu0 0.0
    %387 = vmatprep.subr.mxu0 0.0
    %388 = vmatpush2.msra.mxu0 0.0
    %389 = vmatprep.subr.mxu0 0.0
    %390 = vmatpush2.msra.mxu0 0.0
    %391 = vmatprep.subr.mxu0 0.0
    %392 = vmatpush2.msra.mxu0 0.0
    %393 = vmatprep.subr.mxu0 0.0
    %394 = vmatpush2.msra.mxu0 0.0
    %395 = vmatprep.subr.mxu0 0.0
    %396 = vmatpush2.msra.mxu0 0.0
    %397 = vmatprep.subr.mxu0 0.0
    %398 = vmatpush2.msra.mxu0 0.0
    %399 = vmatprep.subr.mxu0 0.0
    %400 = vmatpush2.msra.mxu0 0.0
    %401 = vmatprep.subr.mxu0 0.0
    %402 = vmatpush2.msra.mxu0 0.0
    %403 = vmatprep.subr.mxu0 0.0
    %404 = vmatpush2.msra.mxu0 0.0
    %405 = vmatprep.subr.mxu0 0.0
    %406 = vmatpush2.msra.mxu0 0.0
    %407 = vmatprep.subr.mxu0 0.0
    %408 = vmatpush2.msra.mxu0 0.0
    %409 = vmatprep.subr.mxu0 0.0
    %410 = vmatpush2.msra.mxu0 0.0
    %411 = vmatprep.mubr.f32.mxu0 0.0
    %412 = vmatmul.mubr.f32.gmra.mxu0 %v345
    %v413 = vpop.f32.mrf.mxu0
    %v414 = vadd.f32 %v342, %v413
    %v415 = vpop.f32.mrf.mxu0
    %416 = vdwg.mxu0
    %vm417 = vcmp.ge.f32.partialorder %v414, 0.0
    %v418 = vsel %vm417, 1.4142135, 0.28284273
    %v419 = vmul.f32 %v414, %v418
    %420 = vst.msk [vmem:[#allocation8] sm:$0x3] %vm56, %v419
    // Predicated region
    $region26: #{tpu_custom_call.1} parent=1 // pred_check
      _
    $region27: #{tpu_custom_call.1} parent=1 // pred_check_branch
      %422 = sbr.rel (0) target = $region29
    $region28: #{tpu_custom_call.1} parent=1 // pred_region
      %s424 = ssub.s32 32, 32
      %425 = vsyncadd [#allocation4], %s424
      %s427 = sshll.u32 [#allocation8], 4
      %s428 = int_to_ptr.vmem [resolvable:$true] %s427
      %430 = dma.vmem_to_hbm [thread:$0]  %s428, 32, %s3, [#allocation4]
    $region29: #{tpu_custom_call.1} parent=1 // pred_fallthru
      _
    // Predicated region
    $region30: #{tpu_custom_call.1} parent=1 // pred_check
      _
    $region31: #{tpu_custom_call.1} parent=1 // pred_check_branch
      %432 = sbr.rel (0) target = $region33
    $region32: #{tpu_custom_call.1} parent=1 // pred_region
      %433 = dma.done [#allocation4], 32
    $region33: #{tpu_custom_call.1} parent=1 // pred_fallthru
      _
    %434 = vsyncpa [#allocation3], 1
    %435 = vsyncpa [#allocation6], 1
    %436 = vsyncpa [#allocation4], 1

</llo_original>
